<compile_context>
chip_gen: v5e
topology: v5e:2x2
jax: 0.10.0
libtpu: 0.0.40
codegen_flags: <defaults>
</compile_context>

<pallas_src>
import functools

import jax
import jax.numpy as jnp
from jax.experimental import pallas as pl
from jax.experimental.pallas import tpu as pltpu

_EPS = 1e-8


def _make_cosine_loss_kernel(batch, block_rows, eps):
    """Kernel producing sum(1 - cos) over one (block_rows, D) batch tile."""
    needs_mask = (batch % block_rows) != 0

    def kernel(f1_ref, f2_ref, out_ref):
        f1 = f1_ref[...].astype(jnp.float32)  # (TB, D)
        f2 = f2_ref[...].astype(jnp.float32)  # (TB, D)

        # Per-row reductions over the feature (lane) axis, kept 2-D.
        dot = jnp.sum(f1 * f2, axis=1, keepdims=True)    # (TB, 1)
        s1 = jnp.sum(f1 * f1, axis=1, keepdims=True)     # (TB, 1)
        s2 = jnp.sum(f2 * f2, axis=1, keepdims=True)     # (TB, 1)

        # cos = dot / max(||f1||*||f2||, eps).  Take sqrt of each squared norm
        # separately so the product can't overflow f32 (s1*s2 could).
        denom = jnp.maximum(jnp.sqrt(s1) * jnp.sqrt(s2), eps)
        term = 1.0 - dot / denom                          # (TB, 1)

        if needs_mask:
            # Padded rows of the last partial tile may hold garbage/NaN; a
            # select on the narrow (TB,1) result discards them.  Do NOT mask
            # the full (TB,D) tiles — that doubles VMEM/VALU for nothing.
            row0 = pl.program_id(0) * block_rows
            row_ids = jax.lax.broadcasted_iota(
                jnp.int32, (block_rows, 1), 0) + row0
            term = jnp.where(row_ids < batch, term, 0.0)

        out_ref[...] = jnp.sum(term, keepdims=True)       # (1, 1) partial sum

    return kernel


def _vmem_limit_bytes():
    """Chip-aware VMEM scope: ~75% of physical, capped at 96 MiB."""
    cap = 64 * 1024 * 1024  # conservative (v7x-sized) fallback
    try:
        info = pltpu.get_tpu_info()
        cap = int(getattr(info, "vmem_capacity_bytes", cap))
    except Exception:
        pass
    return max(min(3 * cap // 4, 96 * 1024 * 1024), 32 * 1024 * 1024)


@functools.partial(jax.jit, static_argnames=("block_rows",))
def cosine_loss(feature1, feature2, *, block_rows=None):
    """feature1, feature2: (B, D). Returns scalar float32 loss."""
    assert feature1.shape == feature2.shape and feature1.ndim == 2
    B, D = feature1.shape
    itemsize = jnp.dtype(feature1.dtype).itemsize
    sublane = 16 if itemsize == 2 else 8

    vmem_limit = _vmem_limit_bytes()

    if block_rows is None:
        # Per-row VMEM cost per grid step:
        #   2 inputs x 2 pipeline buffers at the input dtype  -> 4*D*itemsize
        #   ~3 f32 working tiles inside the body (casts/products) -> 3*D*4
        bytes_per_row = 4 * D * itemsize + 3 * D * 4
        budget = max(vmem_limit - 8 * 1024 * 1024, vmem_limit // 2)
        max_rows = max(budget // bytes_per_row, sublane)
        tb = min(1024, max_rows)
        if B >= 512:
            # Keep >=~4 grid steps when B allows (2 blocks per TensorCore on
            # v7x, DMA/compute overlap everywhere), floor of 256 rows per tile
            # (~85% of HBM roofline per measured tiling data).
            tb = min(tb, max(pl.cdiv(B, 4), 256))
        tb = max((tb // sublane) * sublane, sublane)
    else:
        tb = int(block_rows)

    if tb >= B:
        tb = B  # full-extent block is always a legal block shape

    grid_b = pl.cdiv(B, tb)
    kernel = _make_cosine_loss_kernel(B, tb, _EPS)

    partials = pl.pallas_call(
        kernel,
        out_shape=jax.ShapeDtypeStruct((grid_b, 1), jnp.float32),
        grid=(grid_b,),
        in_specs=[
            pl.BlockSpec((tb, D), lambda i: (i, 0)),
            pl.BlockSpec((tb, D), lambda i: (i, 0)),
        ],
        out_specs=pl.BlockSpec((1, 1), lambda i: (i, 0)),
        compiler_params=pltpu.CompilerParams(
            dimension_semantics=("parallel",),
            vmem_limit_bytes=int(vmem_limit),
        ),
    )(feature1, feature2)

    # Unbiased mean over the *true* batch size (masked pad rows contribute 0).
    return jnp.sum(partials) / B


def _reference(f1, f2):
    f1 = f1.astype(jnp.float32)
    f2 = f2.astype(jnp.float32)
    dot = jnp.sum(f1 * f2, axis=1)
    denom = jnp.maximum(
        jnp.linalg.norm(f1, axis=1) * jnp.linalg.norm(f2, axis=1), _EPS)
    return jnp.mean(1.0 - dot / denom)


if __name__ == "__main__":
    key = jax.random.PRNGKey(0)
    k1, k2, k3, k4, k5, k6 = jax.random.split(key, 6)

    # Case 1: small single-tile shape.
    B, D = 8, 128
    f1 = jax.random.normal(k1, (B, D), dtype=jnp.float32)
    f2 = jax.random.normal(k2, (B, D), dtype=jnp.float32)
    loss = jax.block_until_ready(cosine_loss(f1, f2))
    ref = _reference(f1, f2)
    assert jnp.allclose(loss, ref, atol=1e-5, rtol=1e-5), (loss, ref)

    # Case 2: exercises multi-tile grid + last-tile masking (B % TB != 0).
    B2, D2 = 20, 128
    g1 = jax.random.normal(k3, (B2, D2), dtype=jnp.float32)
    g2 = jax.random.normal(k4, (B2, D2), dtype=jnp.float32)
    loss2 = jax.block_until_ready(cosine_loss(g1, g2, block_rows=8))
    ref2 = _reference(g1, g2)
    assert jnp.allclose(loss2, ref2, atol=1e-5, rtol=1e-5), (loss2, ref2)

    # Case 3: bf16 inputs (narrow HBM traffic, in-kernel f32 accumulation).
    B3, D3 = 32, 256
    h1 = jax.random.normal(k5, (B3, D3), dtype=jnp.bfloat16)
    h2 = jax.random.normal(k6, (B3, D3), dtype=jnp.bfloat16)
    loss3 = jax.block_until_ready(cosine_loss(h1, h2, block_rows=16))
    ref3 = _reference(h1, h2)
    assert jnp.allclose(loss3, ref3, atol=2e-2, rtol=2e-2), (loss3, ref3)

    print("KERNEL_OK")
</pallas_src>

<mosaic_0001>
module attributes {stable_mosaic.version = 11 : i64} {
  func.func @kernel(%arg0: i32, %arg1: memref<8x128xf32, #tpu.memory_space<vmem>>, %arg2: memref<8x128xf32, #tpu.memory_space<vmem>>, %arg3: memref<1x1xf32, #tpu.memory_space<vmem>>) attributes {dimension_semantics = [#tpu.dimension_semantics<parallel>], iteration_bounds = array<i64: 1>, scalar_prefetch = 0 : i64, scratch_operands = 0 : i64, tpu.core_type = #tpu.core_type<tc>, window_params = [{transform_indices = @transform_0, window_bounds = array<i64: 8, 128>}, {transform_indices = @transform_1, window_bounds = array<i64: 8, 128>}, {transform_indices = @transform_2, window_bounds = array<i64: 1, 1>}]} {
    %c0 = arith.constant 0 : index
    %c0_0 = arith.constant 0 : index
    %0 = vector.load %arg1[%c0, %c0_0] : memref<8x128xf32, #tpu.memory_space<vmem>>, vector<8x128xf32>
    %c0_1 = arith.constant 0 : index
    %c0_2 = arith.constant 0 : index
    %1 = vector.load %arg2[%c0_1, %c0_2] : memref<8x128xf32, #tpu.memory_space<vmem>>, vector<8x128xf32>
    %2 = arith.mulf %0, %1 : vector<8x128xf32>
    %cst = arith.constant dense<0.000000e+00> : vector<8xf32>
    %3 = vector.multi_reduction <add>, %2, %cst [1] : vector<8x128xf32> to vector<8xf32>
    %4 = vector.shape_cast %3 : vector<8xf32> to vector<8x1xf32>
    %5 = arith.mulf %0, %0 : vector<8x128xf32>
    %cst_3 = arith.constant dense<0.000000e+00> : vector<8xf32>
    %6 = vector.multi_reduction <add>, %5, %cst_3 [1] : vector<8x128xf32> to vector<8xf32>
    %7 = vector.shape_cast %6 : vector<8xf32> to vector<8x1xf32>
    %8 = arith.mulf %1, %1 : vector<8x128xf32>
    %cst_4 = arith.constant dense<0.000000e+00> : vector<8xf32>
    %9 = vector.multi_reduction <add>, %8, %cst_4 [1] : vector<8x128xf32> to vector<8xf32>
    %10 = vector.shape_cast %9 : vector<8xf32> to vector<8x1xf32>
    %11 = math.sqrt %7 : vector<8x1xf32>
    %12 = math.sqrt %10 : vector<8x1xf32>
    %13 = arith.mulf %11, %12 : vector<8x1xf32>
    %cst_5 = arith.constant 9.99999993E-9 : f32
    %14 = vector.broadcast %cst_5 : f32 to vector<8x1xf32>
    %15 = arith.maximumf %13, %14 : vector<8x1xf32>
    %16 = arith.divf %4, %15 : vector<8x1xf32>
    %cst_6 = arith.constant 1.000000e+00 : f32
    %17 = vector.broadcast %cst_6 : f32 to vector<8x1xf32>
    %18 = arith.subf %17, %16 : vector<8x1xf32>
    %19 = vector.shape_cast %18 : vector<8x1xf32> to vector<1x8x1xf32>
    %cst_7 = arith.constant dense<0.000000e+00> : vector<1xf32>
    %20 = vector.multi_reduction <add>, %19, %cst_7 [1, 2] : vector<1x8x1xf32> to vector<1xf32>
    %21 = vector.shape_cast %20 : vector<1xf32> to vector<1x1x1xf32>
    %22 = vector.extract %21[0, 0, 0] : f32 from vector<1x1x1xf32>
    %23 = vector.broadcast %22 : f32 to vector<1x1xf32>
    %c0_8 = arith.constant 0 : index
    %c0_9 = arith.constant 0 : index
    %24 = vector.load %arg3[%c0_8, %c0_9] : memref<1x1xf32, #tpu.memory_space<vmem>>, vector<1x1xf32>
    tpu.vector_store %arg3[%c0_8, %c0_9], %23 {strides = array<i32>} : memref<1x1xf32, #tpu.memory_space<vmem>>, vector<1x1xf32>,
    return
  }
  func.func @transform_0(%arg0: i32) -> (i32, i32) {
    %c0_i32 = arith.constant 0 : i32
    %c0_i32_0 = arith.constant 0 : i32
    return %arg0, %c0_i32 : i32, i32
  }
  func.func @transform_1(%arg0: i32) -> (i32, i32) {
    %c0_i32 = arith.constant 0 : i32
    %c0_i32_0 = arith.constant 0 : i32
    return %arg0, %c0_i32 : i32, i32
  }
  func.func @transform_2(%arg0: i32) -> (i32, i32) {
    %c0_i32 = arith.constant 0 : i32
    %c0_i32_0 = arith.constant 0 : i32
    return %arg0, %c0_i32 : i32, i32
  }
}

</mosaic_0001>

<llo_original>
// kernel: cosine_loss.1
$region0: #{cosine_loss.1}
  #allocation0 [shape = 'u32[]', space=smem, size = 0x4, offset = 0x4, fixed_abs, tag = 'smem constant byte address 0x4 - core index']
  #allocation1 [shape = 'u32[72,128]{1,0:T(1,128)}', space=vmem, size = 0x9000, scoped, tag = 'internal scratch']
  %s0 = inlined_call_operand.hbm [shape: f32[8,128], index: 0, kind: input, shape index: {}]
  %s1 = inlined_call_operand.hbm [shape: f32[8,128], index: 1, kind: input, shape index: {}]
  %s2 = inlined_call_operand.hbm [shape: f32[1,1], index: 2, kind: output, shape index: {}]
  %s3 = sld [smem:[#allocation0]]
  $region26: #{cosine_loss.1} parent=0
    _
  %s5 = ssub.s32 1, %s3
  %s6 = scalar_select 0, %s5, %s3
  $region1: #{cosine_loss.1} parent=0
    #allocation2 [shape = 'u8[4096]{0}', space=vmem, size = 0x1000, scoped, tag = 'input window, operand 0, single buffered']
    #allocation3 [shape = 's32[1]{0}', space=sflag, size = 0x4, scoped, tag = 'scoped memory for cosine_loss.1']
    #allocation4 [shape = 's32[1]{0}', space=sflag, size = 0x4, scoped, tag = 'scoped memory for cosine_loss.1']
    #allocation5 [shape = 'u8[4096]{0}', space=vmem, size = 0x1000, scoped, tag = 'input window, operand 1, single buffered']
    #allocation6 [shape = 's32[1]{0}', space=sflag, size = 0x4, scoped, tag = 'scoped memory for cosine_loss.1']
    #allocation7 [shape = 'u8[512]{0}', space=vmem, size = 0x400, scoped, tag = 'output window, operand 0, single buffered']
    %7 = vsyncpa [#allocation3], 0
    %8 = vsyncpa [#allocation6], 0
    %9 = vsyncpa [#allocation4], 0
    // Predicated region
    $region2: #{cosine_loss.1} parent=1 // pred_check
      _
    $region3: #{cosine_loss.1} parent=1 // pred_check_branch
      %11 = sbr.rel (0) target = $region5
    $region4: #{cosine_loss.1} parent=1 // pred_region
      %13 = vsyncadd [#allocation3], 0
      %s15 = sshll.u32 %s0, 4
      %s16 = int_to_ptr.hbm [resolvable:$true] %s15
      %s17 = sshll.u32 [#allocation2], 4
      %s18 = int_to_ptr.vmem [resolvable:$true] %s17
      %20 = dma.hbm_to_vmem [thread:$0]  %s16, 128, %s18, [#allocation3]
    $region5: #{cosine_loss.1} parent=1 // pred_fallthru
      _
    // Predicated region
    $region6: #{cosine_loss.1} parent=1 // pred_check
      _
    $region7: #{cosine_loss.1} parent=1 // pred_check_branch
      %22 = sbr.rel (0) target = $region9
    $region8: #{cosine_loss.1} parent=1 // pred_region
      %24 = vsyncadd [#allocation6], 0
      %s26 = sshll.u32 %s1, 4
      %s27 = int_to_ptr.hbm [resolvable:$true] %s26
      %s28 = sshll.u32 [#allocation5], 4
      %s29 = int_to_ptr.vmem [resolvable:$true] %s28
      %31 = dma.hbm_to_vmem [thread:$0]  %s27, 128, %s29, [#allocation6]
    $region9: #{cosine_loss.1} parent=1 // pred_fallthru
      _
    // Predicated region
    $region10: #{cosine_loss.1} parent=1 // pred_check
      _
    $region11: #{cosine_loss.1} parent=1 // pred_check_branch
      %33 = sbr.rel (0) target = $region13
    $region12: #{cosine_loss.1} parent=1 // pred_region
      %35 = dma.done [#allocation3], 128
    $region13: #{cosine_loss.1} parent=1 // pred_fallthru
      _
    // Predicated region
    $region14: #{cosine_loss.1} parent=1 // pred_check
      _
    $region15: #{cosine_loss.1} parent=1 // pred_check_branch
      %37 = sbr.rel (0) target = $region17
    $region16: #{cosine_loss.1} parent=1 // pred_region
      %39 = dma.done [#allocation6], 128
    $region17: #{cosine_loss.1} parent=1 // pred_fallthru
      _
    %v40 = vld [vmem:[#allocation2] sm:$0xff]
    %v41 = vld [vmem:[#allocation5] sm:$0xff]
    %v42 = vmul.f32 %v40, %v41
    %43 = vadd.xlane.f32.xlu0 %v42
    %v44 = vpop.xlane.xlu0 %43
    %v45 = vmul.f32 %v40, %v40
    %46 = vadd.xlane.f32.xlu0 %v45
    %v47 = vpop.xlane.xlu0 %46
    %v48 = vmul.f32 %v41, %v41
    %49 = vadd.xlane.f32.xlu0 %v48
    %v50 = vpop.xlane.xlu0 %49
    %v51 = vrsqrt.pop %v47
    %v52 = vmul.f32 %v51, %v47
    %v53 = vmul.f32 %v52, %v51
    %v54 = vmul.f32 0.5, %v53
    %v55 = vsub.f32 1.5, %v54
    %v56 = vmul.f32 %v51, %v55
    %v57 = vmul.f32 %v47, %v56
    %vm58 = vcmp.eq.f32.partialorder %v47, inf
    %v59 = vsel %vm58, %v47, %v57
    %vm60 = vcmp.eq.f32.partialorder %v47, 0.0
    %v61 = vand.u32 %v47, 2147483648
    %v62 = vsel %vm60, %v61, %v59
    %v63 = vrsqrt.pop %v50
    %v64 = vmul.f32 %v63, %v50
    %v65 = vmul.f32 %v64, %v63
    %v66 = vmul.f32 0.5, %v65
    %v67 = vsub.f32 1.5, %v66
    %v68 = vmul.f32 %v63, %v67
    %v69 = vmul.f32 %v50, %v68
    %vm70 = vcmp.eq.f32.partialorder %v50, inf
    %v71 = vsel %vm70, %v50, %v69
    %vm72 = vcmp.eq.f32.partialorder %v50, 0.0
    %v73 = vand.u32 %v50, 2147483648
    %v74 = vsel %vm72, %v73, %v71
    %v75 = vmul.f32 %v62, %v74
    %v76 = vmax.f32 %v75, 1e-08
    %v77 = vrcp.pop %v76
    %v78 = vmul.f32 %v76, %v77
    %v79 = vsub.f32 1.0, %v78
    %v80 = vmul.f32 %v77, %v79
    %v81 = vadd.f32 %v77, %v80
    %vm82 = vweird.f32 %v76
    %vm83 = vweird.f32 %v77
    %vm84 = vmor %vm82, %vm83
    %v85 = vsel %vm84, %v77, %v81
    %v86 = vand.u32 2147483647, %v76
    %vm87 = vcmp.eq.f32.partialorder %v86, 8.507059e+37
    %v88 = vand.u32 %v76, 2147483648
    %v89 = vor.u32 1.1754944e-38, %v88
    %v90 = vsel %vm87, %v89, %v85
    %v91 = vmul.f32 %v44, %v90
    %v92 = vsub.f32 1.0, %v91
    %vm93 = vcmask 7168
    %v94 = vsel %vm93, %v92, 0.0
    %95 = vadd.xlane.f32.xlu0 %v94
    %v96 = vpop.xlane.xlu0 %95
    %v97 = vrot.slane %v96, 4
    %v98 = vadd.f32 %v96, %v97
    %v99 = vrot.slane %v98, 2
    %v100 = vadd.f32 %v98, %v99
    %v101 = vrot.slane %v100, 1
    %v102 = vadd.f32 %v100, %v101
    %s103 = vtos %v102
    %v104 = vstv %s103
    %vm105 = vcmask 0
    %106 = vst.msk [vmem:[#allocation7] sm:$0x1] %vm105, %v104
    // Predicated region
    $region18: #{cosine_loss.1} parent=1 // pred_check
      _
    $region19: #{cosine_loss.1} parent=1 // pred_check_branch
      %108 = sbr.rel (0) target = $region21
    $region20: #{cosine_loss.1} parent=1 // pred_region
      %110 = vsyncadd [#allocation4], 0
      %s112 = sshll.u32 [#allocation7], 4
      %s113 = int_to_ptr.vmem [resolvable:$true] %s112
      %s114 = sshll.u32 %s2, 4
      %s115 = int_to_ptr.hbm [resolvable:$true] %s114
      %117 = dma.vmem_to_hbm [thread:$0]  %s113, 16, %s115, [#allocation4]
    $region21: #{cosine_loss.1} parent=1 // pred_fallthru
      _
    // Predicated region
    $region22: #{cosine_loss.1} parent=1 // pred_check
      _
    $region23: #{cosine_loss.1} parent=1 // pred_check_branch
      %119 = sbr.rel (0) target = $region25
    $region24: #{cosine_loss.1} parent=1 // pred_region
      %121 = dma.done [#allocation4], 16
    $region25: #{cosine_loss.1} parent=1 // pred_fallthru
      _
    %122 = vsyncpa [#allocation3], 1
    %123 = vsyncpa [#allocation6], 1
    %124 = vsyncpa [#allocation4], 1

</llo_original>
